<compile_context>
chip_gen: v6e
topology: v6e:2x2x1
jax: 0.10.0
libtpu: 0.0.40
codegen_flags: <defaults>
</compile_context>

<pallas_src>
import jax
import jax.numpy as jnp
from jax.experimental import pallas as pl
from jax.experimental.pallas import tpu as pltpu


def ggn_io_b_kernel(x_ref,                                   # (bB, N, D)  f32
                    xi_ref,                                  # (bB, D)     f32
                    adj_ref,                                 # (1, N)      f32
                    w_n2e_s_ref, w_n2e_e_ref, b_n2e_ref,     # (D,H),(D,H) bf16; (1,H) f32
                    w_e2e_ref, b_e2e_ref,                    # (H,H) bf16; (1,H) f32
                    w_e2n_ref, b_e2n_ref,                    # (H,H) bf16; (1,H) f32
                    w_n2n_ref, b_n2n_ref,                    # (H,H) bf16; (1,H) f32
                    w_out_x_ref, w_out_h_ref, b_out_ref,     # (D,D),(H,D) bf16; (1,D) f32
                    out_ref):                                # (bB, D)     f32
    bB, N, D = x_ref.shape
    H = w_e2e_ref.shape[0]
    f32, bf16 = jnp.float32, jnp.bfloat16

    # bf16 MXU operands produced in-kernel (no separate wrapper cast pass).
    x = x_ref[...].astype(bf16)                              # (bB, N, D)
    xi = xi_ref[...].astype(bf16)                            # (bB, D)

    # ---- n2e on cat(x, x_i): split weight -> two MXU matmuls -----------------
    x_flat = x.reshape(bB * N, D)
    h_start = jnp.dot(x_flat, w_n2e_s_ref[...],
                      preferred_element_type=f32)            # (bB*N, H)
    h_end = jnp.dot(xi, w_n2e_e_ref[...],
                    preferred_element_type=f32)              # (bB, H)
    h = h_start.reshape(bB, N, H) + h_end[:, None, :] + b_n2e_ref[...][None, :, :]
    h = jnp.maximum(h, 0.0)                                  # relu (f32)

    # ---- e2e: one (bB*N, H) @ (H, H) MXU matmul ------------------------------
    h = jnp.dot(h.reshape(bB * N, H).astype(bf16), w_e2e_ref[...],
                preferred_element_type=f32)                  # (bB*N, H)
    h = jnp.maximum(h + b_e2e_ref[...], 0.0)                 # relu (f32)

    # ---- adjacency-weighted reduction over nodes: VPU scale + sublane sum ----
    #   s[b] = sum_n adj[n] * h[b, n, :]   (adj kept in f32 -> exact for
    #   general weighted adjacency columns, not just 0/1 masks)
    adj = adj_ref[...].reshape(1, N, 1)                      # (1, N, 1) f32
    hs = h.reshape(bB, N, H) * adj                           # VPU multiply, f32
    s = jnp.sum(hs, axis=1)                                  # (bB, H) XLU sublane reduce

    # ---- e2n -> n2n ----------------------------------------------------------
    s = jnp.maximum(jnp.dot(s.astype(bf16), w_e2n_ref[...],
                            preferred_element_type=f32) + b_e2n_ref[...], 0.0)
    s = jnp.maximum(jnp.dot(s.astype(bf16), w_n2n_ref[...],
                            preferred_element_type=f32) + b_n2n_ref[...], 0.0)

    # ---- output on cat(x_i, s): split weight -> two MXU matmuls --------------
    out = (jnp.dot(xi, w_out_x_ref[...], preferred_element_type=f32)
           + jnp.dot(s.astype(bf16), w_out_h_ref[...], preferred_element_type=f32)
           + b_out_ref[...])                                 # (bB, D) f32
    # TODO(synk): D=16 < 128 lanes, so this store is a masked partial vst; a
    # lane-dense (1, block_b*D) output slab would save a few % if it matters.
    out_ref[...] = out.astype(out_ref.dtype)


def prepare_params(params, dim, hid, mxu_dtype=jnp.bfloat16):
    """One-time parameter preparation (hoisted out of the per-call wrapper):
    PyTorch Linear weights (out, in) -> kernel layout (in, out), concat
    weights split into their two halves, MXU operands cast to bf16, biases
    kept f32 as (1, out) rows."""
    f32 = jnp.float32

    def b2d(b):
        return jnp.asarray(b, f32).reshape(1, -1)

    w_n2e_t = jnp.asarray(params['w_n2e']).T                 # (2D, H)
    w_out_t = jnp.asarray(params['w_out']).T                 # (D+H, D)
    return dict(
        w_n2e_s=w_n2e_t[:dim].astype(mxu_dtype),             # (D, H)  starter half
        w_n2e_e=w_n2e_t[dim:].astype(mxu_dtype),             # (D, H)  ender half
        b_n2e=b2d(params['b_n2e']),
        w_e2e=jnp.asarray(params['w_e2e']).T.astype(mxu_dtype),
        b_e2e=b2d(params['b_e2e']),
        w_e2n=jnp.asarray(params['w_e2n']).T.astype(mxu_dtype),
        b_e2n=b2d(params['b_e2n']),
        w_n2n=jnp.asarray(params['w_n2n']).T.astype(mxu_dtype),
        b_n2n=b2d(params['b_n2n']),
        w_out_x=w_out_t[:dim].astype(mxu_dtype),             # (D, D)  x_i half
        w_out_h=w_out_t[dim:].astype(mxu_dtype),             # (H, D)  hidden half
        b_out=b2d(params['b_out']),
    )


def _pick_batch_block(batch, cap=1024):
    """Largest multiple of 8 that divides `batch`, capped at `cap` and (when
    possible) at batch//2 so the grid has length >= 2 and v7x's two
    TensorCores both get a share.  Falls back to the full batch when batch is
    not a multiple of 8 (a block whose sublane dim is not a multiple of 8
    must cover the full dim); with the O(block_b^2) mask gone this only
    scales VMEM linearly, so it is safe."""
    if batch % 8 != 0:
        return batch
    limit = min(cap, batch if batch < 16 else batch // 2)
    best, d = 8, 8
    while d <= limit:
        if batch % d == 0:
            best = d
        d += 8
    return best


def ggn_io_b_forward(x, adj_col, i, prep):
    """x: (B, N, D) f32, adj_col: (N,), i: static python int node index
    -> (B, D) f32."""
    B, N, D = x.shape
    H = prep['w_e2e'].shape[0]
    i = int(i)
    if not 0 <= i < N:
        raise ValueError(f"node index i={i} out of range [0, {N})")

    block_b = _pick_batch_block(B)
    grid = (B // block_b,)

    x_f32 = x.astype(jnp.float32)                 # no-op for f32 callers
    xi = x_f32[:, i, :]                           # (B, D) static-index slice
    adj2d = adj_col.reshape(1, N).astype(jnp.float32)

    const = lambda b: (0, 0)                      # weights/biases stay VMEM-resident
    grid_spec = pltpu.PrefetchScalarGridSpec(
        num_scalar_prefetch=0,
        grid=grid,
        in_specs=[
            pl.BlockSpec((block_b, N, D), lambda b: (b, 0, 0)),   # x tile
            pl.BlockSpec((block_b, D), lambda b: (b, 0)),         # x_i tile
            pl.BlockSpec((1, N), const),                          # adj (f32)
            pl.BlockSpec((D, H), const), pl.BlockSpec((D, H), const),  # n2e split
            pl.BlockSpec((1, H), const),
            pl.BlockSpec((H, H), const), pl.BlockSpec((1, H), const),  # e2e
            pl.BlockSpec((H, H), const), pl.BlockSpec((1, H), const),  # e2n
            pl.BlockSpec((H, H), const), pl.BlockSpec((1, H), const),  # n2n
            pl.BlockSpec((D, D), const), pl.BlockSpec((H, D), const),  # output split
            pl.BlockSpec((1, D), const),
        ],
        out_specs=pl.BlockSpec((block_b, D), lambda b: (b, 0)),
    )
    # TODO(synk): if the caller loops over node index i, batch i via a second
    # grid axis and keep the i-independent h_start matmul in VMEM scratch.

    return pl.pallas_call(
        ggn_io_b_kernel,
        out_shape=jax.ShapeDtypeStruct((B, D), jnp.float32),
        grid_spec=grid_spec,
        compiler_params=pltpu.CompilerParams(
            dimension_semantics=("parallel",),    # batch tiles independent (dual-TC v7x)
            vmem_limit_bytes=48 * 1024 * 1024,    # headroom inside v7x's 64 MiB VMEM
        ),
    )(x_f32, xi, adj2d,
      prep['w_n2e_s'], prep['w_n2e_e'], prep['b_n2e'],
      prep['w_e2e'], prep['b_e2e'],
      prep['w_e2n'], prep['b_e2n'],
      prep['w_n2n'], prep['b_n2n'],
      prep['w_out_x'], prep['w_out_h'], prep['b_out'])


def ref_forward(x, adj_col, i, params):
    """Pure-JAX f32 reference mirroring the PyTorch forward exactly."""
    starter = x
    ender = jnp.broadcast_to(x[:, i, :][:, None, :], x.shape)
    h = jnp.concatenate([starter, ender], axis=2)
    h = jax.nn.relu(h @ params['w_n2e'].T + params['b_n2e'])
    h = jax.nn.relu(h @ params['w_e2e'].T + params['b_e2e'])
    h = h * adj_col[None, :, None]
    h = jnp.sum(h, axis=1)
    h = jax.nn.relu(h @ params['w_e2n'].T + params['b_e2n'])
    h = jax.nn.relu(h @ params['w_n2n'].T + params['b_n2n'])
    h = jnp.concatenate([x[:, i, :], h], axis=-1)
    return h @ params['w_out'].T + params['b_out']


def ref_forward_mixed(x, adj_col, i, params):
    """Same math with the kernel's precision policy (bf16 matmul operands,
    f32 accumulation, f32 elementwise incl. the adj scale/reduce) for a
    tight correctness check."""
    bf16, f32 = jnp.bfloat16, jnp.float32
    D = x.shape[-1]

    def mm(a, w_oi):  # a @ w_oi.T, bf16 operands, f32 accumulation
        return jnp.dot(a.astype(bf16), w_oi.T.astype(bf16),
                       preferred_element_type=f32)

    x_bf = x.astype(bf16)
    xi = x_bf[:, i, :]
    w_n2e, w_out = params['w_n2e'], params['w_out']
    h = mm(x_bf, w_n2e[:, :D]) + mm(xi, w_n2e[:, D:])[:, None, :] + params['b_n2e']
    h = jax.nn.relu(h)
    h = jax.nn.relu(mm(h, params['w_e2e']) + params['b_e2e'])
    s = jnp.sum(h * adj_col.astype(f32)[None, :, None], axis=1)   # f32 scale+reduce
    s = jax.nn.relu(mm(s, params['w_e2n']) + params['b_e2n'])
    s = jax.nn.relu(mm(s, params['w_n2n']) + params['b_n2n'])
    return mm(xi, w_out[:, :D]) + mm(s, w_out[:, D:]) + params['b_out']


def init_params(key, dim, hid):
    """Synthetic PyTorch-style Linear params: weight (out, in), bias (out,)."""
    def linear(k, fan_in, fan_out):
        kw, kb = jax.random.split(k)
        bound = 1.0 / jnp.sqrt(jnp.float32(fan_in))
        w = jax.random.uniform(kw, (fan_out, fan_in), jnp.float32, -bound, bound)
        b = jax.random.uniform(kb, (fan_out,), jnp.float32, -bound, bound)
        return w, b

    ks = jax.random.split(key, 5)
    p = {}
    p['w_n2e'], p['b_n2e'] = linear(ks[0], 2 * dim, hid)
    p['w_e2e'], p['b_e2e'] = linear(ks[1], hid, hid)
    p['w_e2n'], p['b_e2n'] = linear(ks[2], hid, hid)
    p['w_n2n'], p['b_n2n'] = linear(ks[3], hid, hid)
    p['w_out'], p['b_out'] = linear(ks[4], dim + hid, dim)
    return p


if __name__ == "__main__":
    B, NODE_NUM, DIM, HID = 2, 8, 16, 32
    I = 3

    key = jax.random.PRNGKey(0)
    kx, kadj, kp = jax.random.split(key, 3)

    x = jax.random.normal(kx, (B, NODE_NUM, DIM), jnp.float32)
    adj_col = (jax.random.uniform(kadj, (NODE_NUM,)) > 0.5).astype(jnp.float32)
    params = init_params(kp, DIM, HID)
    prep = prepare_params(params, DIM, HID)   # one-time layout/dtype preparation

    out = ggn_io_b_forward(x, adj_col, I, prep)
    out = jax.block_until_ready(out)

    ref_mixed = ref_forward_mixed(x, adj_col, I, params)  # kernel precision policy
    ref_exact = ref_forward(x, adj_col, I, params)        # pure-f32 PyTorch semantics

    assert out.shape == (B, DIM)
    err_mixed = float(jnp.max(jnp.abs(out - ref_mixed)))
    err_exact = float(jnp.max(jnp.abs(out - ref_exact)))
    assert jnp.allclose(out, ref_mixed, atol=5e-3, rtol=5e-3), (
        f"mismatch vs precision-matched reference: max abs diff {err_mixed}")
    # Loose sanity bound vs full-f32 reference (kernel uses bf16 MXU operands).
    assert err_exact < 0.25, (
        f"mismatch vs f32 reference: max abs diff {err_exact}")

    print("KERNEL_OK")
</pallas_src>

<mosaic_0001>
module attributes {stable_mosaic.version = 11 : i64} {
  func.func @ggn_io_b_kernel(%arg0: i32, %arg1: memref<2x8x16xf32, #tpu.memory_space<vmem>>, %arg2: memref<2x16xf32, #tpu.memory_space<vmem>>, %arg3: memref<1x8xf32, #tpu.memory_space<vmem>>, %arg4: memref<16x32xbf16, #tpu.memory_space<vmem>>, %arg5: memref<16x32xbf16, #tpu.memory_space<vmem>>, %arg6: memref<1x32xf32, #tpu.memory_space<vmem>>, %arg7: memref<32x32xbf16, #tpu.memory_space<vmem>>, %arg8: memref<1x32xf32, #tpu.memory_space<vmem>>, %arg9: memref<32x32xbf16, #tpu.memory_space<vmem>>, %arg10: memref<1x32xf32, #tpu.memory_space<vmem>>, %arg11: memref<32x32xbf16, #tpu.memory_space<vmem>>, %arg12: memref<1x32xf32, #tpu.memory_space<vmem>>, %arg13: memref<16x16xbf16, #tpu.memory_space<vmem>>, %arg14: memref<32x16xbf16, #tpu.memory_space<vmem>>, %arg15: memref<1x16xf32, #tpu.memory_space<vmem>>, %arg16: memref<2x16xf32, #tpu.memory_space<vmem>>) attributes {dimension_semantics = [#tpu.dimension_semantics<parallel>], iteration_bounds = array<i64: 1>, scalar_prefetch = 0 : i64, scratch_operands = 0 : i64, tpu.core_type = #tpu.core_type<tc>, window_params = [{transform_indices = @transform_0, window_bounds = array<i64: 2, 8, 16>}, {transform_indices = @transform_1, window_bounds = array<i64: 2, 16>}, {pipeline_mode = #tpu.pipeline_mode<synchronous>, transform_indices = @transform_2, window_bounds = array<i64: 1, 8>}, {pipeline_mode = #tpu.pipeline_mode<synchronous>, transform_indices = @transform_3, window_bounds = array<i64: 16, 32>}, {pipeline_mode = #tpu.pipeline_mode<synchronous>, transform_indices = @transform_4, window_bounds = array<i64: 16, 32>}, {pipeline_mode = #tpu.pipeline_mode<synchronous>, transform_indices = @transform_5, window_bounds = array<i64: 1, 32>}, {pipeline_mode = #tpu.pipeline_mode<synchronous>, transform_indices = @transform_6, window_bounds = array<i64: 32, 32>}, {pipeline_mode = #tpu.pipeline_mode<synchronous>, transform_indices = @transform_7, window_bounds = array<i64: 1, 32>}, {pipeline_mode = #tpu.pipeline_mode<synchronous>, transform_indices = @transform_8, window_bounds = array<i64: 32, 32>}, {pipeline_mode = #tpu.pipeline_mode<synchronous>, transform_indices = @transform_9, window_bounds = array<i64: 1, 32>}, {pipeline_mode = #tpu.pipeline_mode<synchronous>, transform_indices = @transform_10, window_bounds = array<i64: 32, 32>}, {pipeline_mode = #tpu.pipeline_mode<synchronous>, transform_indices = @transform_11, window_bounds = array<i64: 1, 32>}, {pipeline_mode = #tpu.pipeline_mode<synchronous>, transform_indices = @transform_12, window_bounds = array<i64: 16, 16>}, {pipeline_mode = #tpu.pipeline_mode<synchronous>, transform_indices = @transform_13, window_bounds = array<i64: 32, 16>}, {pipeline_mode = #tpu.pipeline_mode<synchronous>, transform_indices = @transform_14, window_bounds = array<i64: 1, 16>}, {transform_indices = @transform_15, window_bounds = array<i64: 2, 16>}]} {
    %c0 = arith.constant 0 : index
    %c0_0 = arith.constant 0 : index
    %c0_1 = arith.constant 0 : index
    %0 = vector.load %arg1[%c0, %c0_0, %c0_1] : memref<2x8x16xf32, #tpu.memory_space<vmem>>, vector<2x8x16xf32>
    %1 = arith.truncf %0 : vector<2x8x16xf32> to vector<2x8x16xbf16>
    %c0_2 = arith.constant 0 : index
    %c0_3 = arith.constant 0 : index
    %2 = vector.load %arg2[%c0_2, %c0_3] : memref<2x16xf32, #tpu.memory_space<vmem>>, vector<2x16xf32>
    %3 = arith.truncf %2 : vector<2x16xf32> to vector<2x16xbf16>
    %4 = vector.shape_cast %1 : vector<2x8x16xbf16> to vector<16x16xbf16>
    %c0_4 = arith.constant 0 : index
    %c0_5 = arith.constant 0 : index
    %5 = vector.load %arg4[%c0_4, %c0_5] : memref<16x32xbf16, #tpu.memory_space<vmem>>, vector<16x32xbf16>
    %cst = arith.constant dense<0.000000e+00> : vector<16x32xf32>
    %6 = tpu.matmul %4, %5, %cst {dimension_numbers = #tpu.dot_dimension_numbers<[1], [0], [0], [1], [0, 0, 1, 1], [], []>} : vector<16x16xbf16>, vector<16x32xbf16>, vector<16x32xf32> -> vector<16x32xf32>
    %c0_6 = arith.constant 0 : index
    %c0_7 = arith.constant 0 : index
    %7 = vector.load %arg5[%c0_6, %c0_7] : memref<16x32xbf16, #tpu.memory_space<vmem>>, vector<16x32xbf16>
    %cst_8 = arith.constant dense<0.000000e+00> : vector<2x32xf32>
    %8 = tpu.matmul %3, %7, %cst_8 {dimension_numbers = #tpu.dot_dimension_numbers<[1], [0], [0], [1], [0, 0, 1, 1], [], []>} : vector<2x16xbf16>, vector<16x32xbf16>, vector<2x32xf32> -> vector<2x32xf32>
    %9 = vector.shape_cast %6 : vector<16x32xf32> to vector<2x8x32xf32>
    %10 = vector.shape_cast %8 : vector<2x32xf32> to vector<2x1x32xf32>
    %11 = vector.broadcast %10 : vector<2x1x32xf32> to vector<2x8x32xf32>
    %12 = arith.addf %9, %11 : vector<2x8x32xf32>
    %c0_9 = arith.constant 0 : index
    %c0_10 = arith.constant 0 : index
    %13 = vector.load %arg6[%c0_9, %c0_10] : memref<1x32xf32, #tpu.memory_space<vmem>>, vector<1x32xf32>
    %14 = vector.shape_cast %13 : vector<1x32xf32> to vector<1x1x32xf32>
    %15 = vector.broadcast %14 : vector<1x1x32xf32> to vector<2x8x32xf32>
    %16 = arith.addf %12, %15 : vector<2x8x32xf32>
    %cst_11 = arith.constant 0.000000e+00 : f32
    %17 = vector.broadcast %cst_11 : f32 to vector<2x8x32xf32>
    %18 = arith.maximumf %16, %17 : vector<2x8x32xf32>
    %19 = vector.shape_cast %18 : vector<2x8x32xf32> to vector<16x32xf32>
    %20 = arith.truncf %19 : vector<16x32xf32> to vector<16x32xbf16>
    %c0_12 = arith.constant 0 : index
    %c0_13 = arith.constant 0 : index
    %21 = vector.load %arg7[%c0_12, %c0_13] : memref<32x32xbf16, #tpu.memory_space<vmem>>, vector<32x32xbf16>
    %cst_14 = arith.constant dense<0.000000e+00> : vector<16x32xf32>
    %22 = tpu.matmul %20, %21, %cst_14 {dimension_numbers = #tpu.dot_dimension_numbers<[1], [0], [0], [1], [0, 0, 1, 1], [], []>} : vector<16x32xbf16>, vector<32x32xbf16>, vector<16x32xf32> -> vector<16x32xf32>
    %c0_15 = arith.constant 0 : index
    %c0_16 = arith.constant 0 : index
    %23 = vector.load %arg8[%c0_15, %c0_16] : memref<1x32xf32, #tpu.memory_space<vmem>>, vector<1x32xf32>
    %24 = vector.broadcast %23 : vector<1x32xf32> to vector<16x32xf32>
    %25 = arith.addf %22, %24 : vector<16x32xf32>
    %cst_17 = arith.constant 0.000000e+00 : f32
    %26 = vector.broadcast %cst_17 : f32 to vector<16x32xf32>
    %27 = arith.maximumf %25, %26 : vector<16x32xf32>
    %c0_18 = arith.constant 0 : index
    %c0_19 = arith.constant 0 : index
    %28 = vector.load %arg3[%c0_18, %c0_19] : memref<1x8xf32, #tpu.memory_space<vmem>>, vector<1x8xf32>
    %29 = vector.shape_cast %28 : vector<1x8xf32> to vector<1x8x1xf32>
    %30 = vector.shape_cast %27 : vector<16x32xf32> to vector<2x8x32xf32>
    %31 = vector.broadcast %29 : vector<1x8x1xf32> to vector<2x8x32xf32>
    %32 = arith.mulf %30, %31 : vector<2x8x32xf32>
    %cst_20 = arith.constant dense<0.000000e+00> : vector<2x32xf32>
    %33 = vector.multi_reduction <add>, %32, %cst_20 [1] : vector<2x8x32xf32> to vector<2x32xf32>
    %34 = arith.truncf %33 : vector<2x32xf32> to vector<2x32xbf16>
    %c0_21 = arith.constant 0 : index
    %c0_22 = arith.constant 0 : index
    %35 = vector.load %arg9[%c0_21, %c0_22] : memref<32x32xbf16, #tpu.memory_space<vmem>>, vector<32x32xbf16>
    %cst_23 = arith.constant dense<0.000000e+00> : vector<2x32xf32>
    %36 = tpu.matmul %34, %35, %cst_23 {dimension_numbers = #tpu.dot_dimension_numbers<[1], [0], [0], [1], [0, 0, 1, 1], [], []>} : vector<2x32xbf16>, vector<32x32xbf16>, vector<2x32xf32> -> vector<2x32xf32>
    %c0_24 = arith.constant 0 : index
    %c0_25 = arith.constant 0 : index
    %37 = vector.load %arg10[%c0_24, %c0_25] : memref<1x32xf32, #tpu.memory_space<vmem>>, vector<1x32xf32>
    %38 = vector.broadcast %37 : vector<1x32xf32> to vector<2x32xf32>
    %39 = arith.addf %36, %38 : vector<2x32xf32>
    %cst_26 = arith.constant 0.000000e+00 : f32
    %40 = vector.broadcast %cst_26 : f32 to vector<2x32xf32>
    %41 = arith.maximumf %39, %40 : vector<2x32xf32>
    %42 = arith.truncf %41 : vector<2x32xf32> to vector<2x32xbf16>
    %c0_27 = arith.constant 0 : index
    %c0_28 = arith.constant 0 : index
    %43 = vector.load %arg11[%c0_27, %c0_28] : memref<32x32xbf16, #tpu.memory_space<vmem>>, vector<32x32xbf16>
    %cst_29 = arith.constant dense<0.000000e+00> : vector<2x32xf32>
    %44 = tpu.matmul %42, %43, %cst_29 {dimension_numbers = #tpu.dot_dimension_numbers<[1], [0], [0], [1], [0, 0, 1, 1], [], []>} : vector<2x32xbf16>, vector<32x32xbf16>, vector<2x32xf32> -> vector<2x32xf32>
    %c0_30 = arith.constant 0 : index
    %c0_31 = arith.constant 0 : index
    %45 = vector.load %arg12[%c0_30, %c0_31] : memref<1x32xf32, #tpu.memory_space<vmem>>, vector<1x32xf32>
    %46 = vector.broadcast %45 : vector<1x32xf32> to vector<2x32xf32>
    %47 = arith.addf %44, %46 : vector<2x32xf32>
    %cst_32 = arith.constant 0.000000e+00 : f32
    %48 = vector.broadcast %cst_32 : f32 to vector<2x32xf32>
    %49 = arith.maximumf %47, %48 : vector<2x32xf32>
    %c0_33 = arith.constant 0 : index
    %c0_34 = arith.constant 0 : index
    %50 = vector.load %arg13[%c0_33, %c0_34] : memref<16x16xbf16, #tpu.memory_space<vmem>>, vector<16x16xbf16>
    %cst_35 = arith.constant dense<0.000000e+00> : vector<2x16xf32>
    %51 = tpu.matmul %3, %50, %cst_35 {dimension_numbers = #tpu.dot_dimension_numbers<[1], [0], [0], [1], [0, 0, 1, 1], [], []>} : vector<2x16xbf16>, vector<16x16xbf16>, vector<2x16xf32> -> vector<2x16xf32>
    %52 = arith.truncf %49 : vector<2x32xf32> to vector<2x32xbf16>
    %c0_36 = arith.constant 0 : index
    %c0_37 = arith.constant 0 : index
    %53 = vector.load %arg14[%c0_36, %c0_37] : memref<32x16xbf16, #tpu.memory_space<vmem>>, vector<32x16xbf16>
    %cst_38 = arith.constant dense<0.000000e+00> : vector<2x16xf32>
    %54 = tpu.matmul %52, %53, %cst_38 {dimension_numbers = #tpu.dot_dimension_numbers<[1], [0], [0], [1], [0, 0, 1, 1], [], []>} : vector<2x32xbf16>, vector<32x16xbf16>, vector<2x16xf32> -> vector<2x16xf32>
    %55 = arith.addf %51, %54 : vector<2x16xf32>
    %c0_39 = arith.constant 0 : index
    %c0_40 = arith.constant 0 : index
    %56 = vector.load %arg15[%c0_39, %c0_40] : memref<1x16xf32, #tpu.memory_space<vmem>>, vector<1x16xf32>
    %57 = vector.broadcast %56 : vector<1x16xf32> to vector<2x16xf32>
    %58 = arith.addf %55, %57 : vector<2x16xf32>
    %c0_41 = arith.constant 0 : index
    %c0_42 = arith.constant 0 : index
    %59 = vector.load %arg16[%c0_41, %c0_42] : memref<2x16xf32, #tpu.memory_space<vmem>>, vector<2x16xf32>
    tpu.vector_store %arg16[%c0_41, %c0_42], %58 {strides = array<i32>} : memref<2x16xf32, #tpu.memory_space<vmem>>, vector<2x16xf32>,
    return
  }
  func.func @transform_0(%arg0: i32) -> (i32, i32, i32) {
    %c0_i32 = arith.constant 0 : i32
    %c0_i32_0 = arith.constant 0 : i32
    %c0_i32_1 = arith.constant 0 : i32
    return %arg0, %c0_i32, %c0_i32_0 : i32, i32, i32
  }
  func.func @transform_1(%arg0: i32) -> (i32, i32) {
    %c0_i32 = arith.constant 0 : i32
    %c0_i32_0 = arith.constant 0 : i32
    return %arg0, %c0_i32 : i32, i32
  }
  func.func @transform_2(%arg0: i32) -> (i32, i32) {
    %c0_i32 = arith.constant 0 : i32
    %c0_i32_0 = arith.constant 0 : i32
    %c0_i32_1 = arith.constant 0 : i32
    return %c0_i32, %c0_i32_0 : i32, i32
  }
  func.func @transform_3(%arg0: i32) -> (i32, i32) {
    %c0_i32 = arith.constant 0 : i32
    %c0_i32_0 = arith.constant 0 : i32
    %c0_i32_1 = arith.constant 0 : i32
    return %c0_i32, %c0_i32_0 : i32, i32
  }
  func.func @transform_4(%arg0: i32) -> (i32, i32) {
    %c0_i32 = arith.constant 0 : i32
    %c0_i32_0 = arith.constant 0 : i32
    %c0_i32_1 = arith.constant 0 : i32
    return %c0_i32, %c0_i32_0 : i32, i32
  }
  func.func @transform_5(%arg0: i32) -> (i32, i32) {
    %c0_i32 = arith.constant 0 : i32
    %c0_i32_0 = arith.constant 0 : i32
    %c0_i32_1 = arith.constant 0 : i32
    return %c0_i32, %c0_i32_0 : i32, i32
  }
  func.func @transform_6(%arg0: i32) -> (i32, i32) {
    %c0_i32 = arith.constant 0 : i32
    %c0_i32_0 = arith.constant 0 : i32
    %c0_i32_1 = arith.constant 0 : i32
    return %c0_i32, %c0_i32_0 : i32, i32
  }
  func.func @transform_7(%arg0: i32) -> (i32, i32) {
    %c0_i32 = arith.constant 0 : i32
    %c0_i32_0 = arith.constant 0 : i32
    %c0_i32_1 = arith.constant 0 : i32
    return %c0_i32, %c0_i32_0 : i32, i32
  }
  func.func @transform_8(%arg0: i32) -> (i32, i32) {
    %c0_i32 = arith.constant 0 : i32
    %c0_i32_0 = arith.constant 0 : i32
    %c0_i32_1 = arith.constant 0 : i32
    return %c0_i32, %c0_i32_0 : i32, i32
  }
  func.func @transform_9(%arg0: i32) -> (i32, i32) {
    %c0_i32 = arith.constant 0 : i32
    %c0_i32_0 = arith.constant 0 : i32
    %c0_i32_1 = arith.constant 0 : i32
    return %c0_i32, %c0_i32_0 : i32, i32
  }
  func.func @transform_10(%arg0: i32) -> (i32, i32) {
    %c0_i32 = arith.constant 0 : i32
    %c0_i32_0 = arith.constant 0 : i32
    %c0_i32_1 = arith.constant 0 : i32
    return %c0_i32, %c0_i32_0 : i32, i32
  }
  func.func @transform_11(%arg0: i32) -> (i32, i32) {
    %c0_i32 = arith.constant 0 : i32
    %c0_i32_0 = arith.constant 0 : i32
    %c0_i32_1 = arith.constant 0 : i32
    return %c0_i32, %c0_i32_0 : i32, i32
  }
  func.func @transform_12(%arg0: i32) -> (i32, i32) {
    %c0_i32 = arith.constant 0 : i32
    %c0_i32_0 = arith.constant 0 : i32
    %c0_i32_1 = arith.constant 0 : i32
    return %c0_i32, %c0_i32_0 : i32, i32
  }
  func.func @transform_13(%arg0: i32) -> (i32, i32) {
    %c0_i32 = arith.constant 0 : i32
    %c0_i32_0 = arith.constant 0 : i32
    %c0_i32_1 = arith.constant 0 : i32
    return %c0_i32, %c0_i32_0 : i32, i32
  }
  func.func @transform_14(%arg0: i32) -> (i32, i32) {
    %c0_i32 = arith.constant 0 : i32
    %c0_i32_0 = arith.constant 0 : i32
    %c0_i32_1 = arith.constant 0 : i32
    return %c0_i32, %c0_i32_0 : i32, i32
  }
  func.func @transform_15(%arg0: i32) -> (i32, i32) {
    %c0_i32 = arith.constant 0 : i32
    %c0_i32_0 = arith.constant 0 : i32
    return %arg0, %c0_i32 : i32, i32
  }
}

</mosaic_0001>

<llo_original>
// kernel: tpu_custom_call.1
$region0: #{tpu_custom_call.1}
  #allocation0 [shape = 'u32[]', space=smem, size = 0x4, offset = 0x4, fixed_abs, tag = 'smem constant byte address 0x4 - core index']
  #allocation1 [shape = 'u32[144,128]{1,0:T(1,128)}', space=vmem, size = 0x12000, scoped, tag = 'internal scratch']
  %s0 = inlined_call_operand.vmem [shape: f32[2,8,16], index: 0, kind: input, shape index: {}]
  %s1 = inlined_call_operand.hbm [shape: f32[2,16], index: 1, kind: input, shape index: {}]
  %s2 = inlined_call_operand.hbm [shape: f32[1,8], index: 2, kind: input, shape index: {}]
  %s3 = inlined_call_operand.hbm [shape: bf16[16,32], index: 3, kind: input, shape index: {}]
  %s4 = inlined_call_operand.hbm [shape: bf16[16,32], index: 4, kind: input, shape index: {}]
  %s5 = inlined_call_operand.hbm [shape: f32[1,32], index: 5, kind: input, shape index: {}]
  %s6 = inlined_call_operand.vmem [shape: bf16[32,32], index: 6, kind: input, shape index: {}]
  %s7 = inlined_call_operand.hbm [shape: f32[1,32], index: 7, kind: input, shape index: {}]
  %s8 = inlined_call_operand.hbm [shape: bf16[32,32], index: 8, kind: input, shape index: {}]
  %s9 = inlined_call_operand.hbm [shape: f32[1,32], index: 9, kind: input, shape index: {}]
  %s10 = inlined_call_operand.hbm [shape: bf16[32,32], index: 10, kind: input, shape index: {}]
  %s11 = inlined_call_operand.vmem [shape: f32[1,32], index: 11, kind: input, shape index: {}]
  %s12 = inlined_call_operand.vmem [shape: bf16[16,16], index: 12, kind: input, shape index: {}]
  %s13 = inlined_call_operand.vmem [shape: bf16[32,16], index: 13, kind: input, shape index: {}]
  %s14 = inlined_call_operand.vmem [shape: f32[1,16], index: 14, kind: input, shape index: {}]
  %s15 = inlined_call_operand.hbm [shape: f32[2,16], index: 15, kind: output, shape index: {}]
  %s16 = sld [smem:[#allocation0]]
  $region106: #{tpu_custom_call.1} parent=0
    _
  %s18 = ssub.s32 1, %s16
  %s19 = scalar_select 0, %s18, %s16
  $region1: #{tpu_custom_call.1} parent=0
    #allocation2 [shape = 'u8[1024]{0}', space=vmem, size = 0x400, scoped, tag = 'input window, operand 1, single buffered']
    #allocation3 [shape = 's32[1]{0}', space=sflag, size = 0x4, scoped, tag = 'scoped memory for tpu_custom_call.1']
    #allocation4 [shape = 's32[1]{0}', space=sflag, size = 0x4, scoped, tag = 'scoped memory for tpu_custom_call.1']
    #allocation5 [shape = 'u8[512]{0}', space=vmem, size = 0x400, scoped, tag = 'input window, operand 2, single buffered']
    #allocation6 [shape = 's32[1]{0}', space=sflag, size = 0x4, scoped, tag = 'scoped memory for tpu_custom_call.1']
    #allocation7 [shape = 'u8[4096]{0}', space=vmem, size = 0x1000, scoped, tag = 'input window, operand 3, single buffered']
    #allocation8 [shape = 'u8[4096]{0}', space=vmem, size = 0x1000, scoped, tag = 'input window, operand 4, single buffered']
    #allocation9 [shape = 's32[1]{0}', space=sflag, size = 0x4, scoped, tag = 'scoped memory for tpu_custom_call.1']
    #allocation10 [shape = 'u8[512]{0}', space=vmem, size = 0x400, scoped, tag = 'input window, operand 5, single buffered']
    #allocation11 [shape = 'u8[512]{0}', space=vmem, size = 0x400, scoped, tag = 'input window, operand 7, single buffered']
    #allocation12 [shape = 's32[1]{0}', space=sflag, size = 0x4, scoped, tag = 'scoped memory for tpu_custom_call.1']
    #allocation13 [shape = 'u8[8192]{0}', space=vmem, size = 0x2000, scoped, tag = 'input window, operand 8, single buffered']
    #allocation14 [shape = 'u8[512]{0}', space=vmem, size = 0x400, scoped, tag = 'input window, operand 9, single buffered']
    #allocation15 [shape = 's32[1]{0}', space=sflag, size = 0x4, scoped, tag = 'scoped memory for tpu_custom_call.1']
    #allocation16 [shape = 'u8[8192]{0}', space=vmem, size = 0x2000, scoped, tag = 'input window, operand 10, single buffered']
    #allocation17 [shape = 'u8[1024]{0}', space=vmem, size = 0x400, scoped, tag = 'output window, operand 0, single buffered']
    %20 = vsyncpa [#allocation3], 0
    %21 = vsyncpa [#allocation6], 0
    %22 = vsyncpa [#allocation9], 0
    %23 = vsyncpa [#allocation12], 0
    %24 = vsyncpa [#allocation15], 0
    %25 = vsyncpa [#allocation4], 0
    // Predicated region
    $region2: #{tpu_custom_call.1} parent=1 // pred_check
      _
    $region3: #{tpu_custom_call.1} parent=1 // pred_check_branch
      %27 = sbr.rel (0) target = $region5
    $region4: #{tpu_custom_call.1} parent=1 // pred_region
      _
    $region5: #{tpu_custom_call.1} parent=1 // pred_fallthru
      _
    // Predicated region
    $region6: #{tpu_custom_call.1} parent=1 // pred_check
      _
    $region7: #{tpu_custom_call.1} parent=1 // pred_check_branch
      %29 = sbr.rel (0) target = $region9
    $region8: #{tpu_custom_call.1} parent=1 // pred_region
      %s31 = ssub.s32 32, 32
      %32 = vsyncadd [#allocation3], %s31
      %s34 = sshll.u32 [#allocation2], 4
      %s35 = int_to_ptr.vmem [resolvable:$true] %s34
      %37 = dma.hbm_to_vmem [thread:$0]  %s1, 32, %s35, [#allocation3]
    $region9: #{tpu_custom_call.1} parent=1 // pred_fallthru
      _
    // Predicated region
    $region10: #{tpu_custom_call.1} parent=1 // pred_check
      _
    $region11: #{tpu_custom_call.1} parent=1 // pred_check_branch
      %39 = sbr.rel (0) target = $region13
    $region12: #{tpu_custom_call.1} parent=1 // pred_region
      %s41 = ssub.s32 16, 16
      %42 = vsyncadd [#allocation6], %s41
      %s44 = sshll.u32 [#allocation5], 4
      %s45 = int_to_ptr.vmem [resolvable:$true] %s44
      %47 = dma.hbm_to_vmem [thread:$0]  %s2, 16, %s45, [#allocation6]
    $region13: #{tpu_custom_call.1} parent=1 // pred_fallthru
      _
    // Predicated region
    $region14: #{tpu_custom_call.1} parent=1 // pred_check
      _
    $region15: #{tpu_custom_call.1} parent=1 // pred_check_branch
      %49 = sbr.rel (0) target = $region17
    $region16: #{tpu_custom_call.1} parent=1 // pred_region
      %s51 = ssub.s32 128, 128
      %52 = vsyncadd [#allocation6], %s51
      %s53 = sshll.u32 [#allocation7], 4
      %s54 = int_to_ptr.vmem [resolvable:$true] %s53
      %59 = dma.hbm_to_vmem [thread:$0]  %s3, 128, %s54, [#allocation6], 64, 64, 4
    $region17: #{tpu_custom_call.1} parent=1 // pred_fallthru
      _
    // Predicated region
    $region18: #{tpu_custom_call.1} parent=1 // pred_check
      _
    $region19: #{tpu_custom_call.1} parent=1 // pred_check_branch
      %61 = sbr.rel (0) target = $region21
    $region20: #{tpu_custom_call.1} parent=1 // pred_region
      %s63 = ssub.s32 128, 128
      %64 = vsyncadd [#allocation9], %s63
      %s65 = sshll.u32 [#allocation8], 4
      %s66 = int_to_ptr.vmem [resolvable:$true] %s65
      %71 = dma.hbm_to_vmem [thread:$0]  %s4, 128, %s66, [#allocation9], 64, 64, 4
    $region21: #{tpu_custom_call.1} parent=1 // pred_fallthru
      _
    // Predicated region
    $region22: #{tpu_custom_call.1} parent=1 // pred_check
      _
    $region23: #{tpu_custom_call.1} parent=1 // pred_check_branch
      %73 = sbr.rel (0) target = $region25
    $region24: #{tpu_custom_call.1} parent=1 // pred_region
      %s75 = ssub.s32 16, 16
      %76 = vsyncadd [#allocation9], %s75
      %s78 = sshll.u32 [#allocation10], 4
      %s79 = int_to_ptr.vmem [resolvable:$true] %s78
      %81 = dma.hbm_to_vmem [thread:$0]  %s5, 16, %s79, [#allocation9]
    $region25: #{tpu_custom_call.1} parent=1 // pred_fallthru
      _
    // Predicated region
    $region26: #{tpu_custom_call.1} parent=1 // pred_check
      _
    $region27: #{tpu_custom_call.1} parent=1 // pred_check_branch
      %83 = sbr.rel (0) target = $region29
    $region28: #{tpu_custom_call.1} parent=1 // pred_region
      _
    $region29: #{tpu_custom_call.1} parent=1 // pred_fallthru
      _
    // Predicated region
    $region30: #{tpu_custom_call.1} parent=1 // pred_check
      _
    $region31: #{tpu_custom_call.1} parent=1 // pred_check_branch
      %85 = sbr.rel (0) target = $region33
    $region32: #{tpu_custom_call.1} parent=1 // pred_region
      %s87 = ssub.s32 16, 16
      %88 = vsyncadd [#allocation12], %s87
      %s90 = sshll.u32 [#allocation11], 4
      %s91 = int_to_ptr.vmem [resolvable:$true] %s90
      %93 = dma.hbm_to_vmem [thread:$0]  %s7, 16, %s91, [#allocation12]
    $region33: #{tpu_custom_call.1} parent=1 // pred_fallthru
      _
    // Predicated region
    $region34: #{tpu_custom_call.1} parent=1 // pred_check
      _
    $region35: #{tpu_custom_call.1} parent=1 // pred_check_branch
      %95 = sbr.rel (0) target = $region37
    $region36: #{tpu_custom_call.1} parent=1 // pred_region
      %s97 = ssub.s32 256, 256
      %98 = vsyncadd [#allocation12], %s97
      %s99 = sshll.u32 [#allocation13], 4
      %s100 = int_to_ptr.vmem [resolvable:$true] %s99
      %105 = dma.hbm_to_vmem [thread:$0]  %s8, 256, %s100, [#allocation12], 64, 64, 4
    $region37: #{tpu_custom_call.1} parent=1 // pred_fallthru
      _
    // Predicated region
    $region38: #{tpu_custom_call.1} parent=1 // pred_check
      _
    $region39: #{tpu_custom_call.1} parent=1 // pred_check_branch
      %107 = sbr.rel (0) target = $region41
    $region40: #{tpu_custom_call.1} parent=1 // pred_region
      %s109 = ssub.s32 16, 16
      %110 = vsyncadd [#allocation15], %s109
      %s112 = sshll.u32 [#allocation14], 4
      %s113 = int_to_ptr.vmem [resolvable:$true] %s112
      %115 = dma.hbm_to_vmem [thread:$0]  %s9, 16, %s113, [#allocation15]
    $region41: #{tpu_custom_call.1} parent=1 // pred_fallthru
      _
    // Predicated region
    $region42: #{tpu_custom_call.1} parent=1 // pred_check
      _
    $region43: #{tpu_custom_call.1} parent=1 // pred_check_branch
      %117 = sbr.rel (0) target = $region45
    $region44: #{tpu_custom_call.1} parent=1 // pred_region
      %s119 = ssub.s32 256, 256
      %120 = vsyncadd [#allocation15], %s119
      %s121 = sshll.u32 [#allocation16], 4
      %s122 = int_to_ptr.vmem [resolvable:$true] %s121
      %127 = dma.hbm_to_vmem [thread:$0]  %s10, 256, %s122, [#allocation15], 64, 64, 4
    $region45: #{tpu_custom_call.1} parent=1 // pred_fallthru
      _
    // Predicated region
    $region46: #{tpu_custom_call.1} parent=1 // pred_check
      _
    $region47: #{tpu_custom_call.1} parent=1 // pred_check_branch
      %129 = sbr.rel (0) target = $region49
    $region48: #{tpu_custom_call.1} parent=1 // pred_region
      _
    $region49: #{tpu_custom_call.1} parent=1 // pred_fallthru
      _
    // Predicated region
    $region50: #{tpu_custom_call.1} parent=1 // pred_check
      _
    $region51: #{tpu_custom_call.1} parent=1 // pred_check_branch
      %131 = sbr.rel (0) target = $region53
    $region52: #{tpu_custom_call.1} parent=1 // pred_region
      _
    $region53: #{tpu_custom_call.1} parent=1 // pred_fallthru
      _
    // Predicated region
    $region54: #{tpu_custom_call.1} parent=1 // pred_check
      _
    $region55: #{tpu_custom_call.1} parent=1 // pred_check_branch
      %133 = sbr.rel (0) target = $region57
    $region56: #{tpu_custom_call.1} parent=1 // pred_region
      _
    $region57: #{tpu_custom_call.1} parent=1 // pred_fallthru
      _
    // Predicated region
    $region58: #{tpu_custom_call.1} parent=1 // pred_check
      _
    $region59: #{tpu_custom_call.1} parent=1 // pred_check_branch
      %135 = sbr.rel (0) target = $region61
    $region60: #{tpu_custom_call.1} parent=1 // pred_region
      _
    $region61: #{tpu_custom_call.1} parent=1 // pred_fallthru
      _
    // Predicated region
    $region62: #{tpu_custom_call.1} parent=1 // pred_check
      _
    $region63: #{tpu_custom_call.1} parent=1 // pred_check_branch
      %137 = sbr.rel (0) target = $region65
    $region64: #{tpu_custom_call.1} parent=1 // pred_region
      %138 = dma.done [#allocation3], 32
    $region65: #{tpu_custom_call.1} parent=1 // pred_fallthru
      _
    // Predicated region
    $region66: #{tpu_custom_call.1} parent=1 // pred_check
      _
    $region67: #{tpu_custom_call.1} parent=1 // pred_check_branch
      %140 = sbr.rel (0) target = $region69
    $region68: #{tpu_custom_call.1} parent=1 // pred_region
      %141 = dma.done [#allocation6], 16
    $region69: #{tpu_custom_call.1} parent=1 // pred_fallthru
      _
    // Predicated region
    $region70: #{tpu_custom_call.1} parent=1 // pred_check
      _
    $region71: #{tpu_custom_call.1} parent=1 // pred_check_branch
      %143 = sbr.rel (0) target = $region73
    $region72: #{tpu_custom_call.1} parent=1 // pred_region
      %144 = dma.done [#allocation6], 128
    $region73: #{tpu_custom_call.1} parent=1 // pred_fallthru
      _
    // Predicated region
    $region74: #{tpu_custom_call.1} parent=1 // pred_check
      _
    $region75: #{tpu_custom_call.1} parent=1 // pred_check_branch
      %146 = sbr.rel (0) target = $region77
    $region76: #{tpu_custom_call.1} parent=1 // pred_region
      %147 = dma.done [#allocation9], 128
    $region77: #{tpu_custom_call.1} parent=1 // pred_fallthru
      _
    // Predicated region
    $region78: #{tpu_custom_call.1} parent=1 // pred_check
      _
    $region79: #{tpu_custom_call.1} parent=1 // pred_check_branch
      %149 = sbr.rel (0) target = $region81
    $region80: #{tpu_custom_call.1} parent=1 // pred_region
      %150 = dma.done [#allocation9], 16
    $region81: #{tpu_custom_call.1} parent=1 // pred_fallthru
      _
    // Predicated region
    $region82: #{tpu_custom_call.1} parent=1 // pred_check
      _
    $region83: #{tpu_custom_call.1} parent=1 // pred_check_branch
      %152 = sbr.rel (0) target = $region85
    $region84: #{tpu_custom_call.1} parent=1 // pred_region
      %153 = dma.done [#allocation12], 16
    $region85: #{tpu_custom_call.1} parent=1 // pred_fallthru
      _
    // Predicated region
    $region86: #{tpu_custom_call.1} parent=1 // pred_check
      _
    $region87: #{tpu_custom_call.1} parent=1 // pred_check_branch
      %155 = sbr.rel (0) target = $region89
    $region88: #{tpu_custom_call.1} parent=1 // pred_region
      %156 = dma.done [#allocation12], 256
    $region89: #{tpu_custom_call.1} parent=1 // pred_fallthru
      _
    // Predicated region
    $region90: #{tpu_custom_call.1} parent=1 // pred_check
      _
    $region91: #{tpu_custom_call.1} parent=1 // pred_check_branch
      %158 = sbr.rel (0) target = $region93
    $region92: #{tpu_custom_call.1} parent=1 // pred_region
      %159 = dma.done [#allocation15], 16
    $region93: #{tpu_custom_call.1} parent=1 // pred_fallthru
      _
    // Predicated region
    $region94: #{tpu_custom_call.1} parent=1 // pred_check
      _
    $region95: #{tpu_custom_call.1} parent=1 // pred_check_branch
      %161 = sbr.rel (0) target = $region97
    $region96: #{tpu_custom_call.1} parent=1 // pred_region
      %162 = dma.done [#allocation15], 256
    $region97: #{tpu_custom_call.1} parent=1 // pred_fallthru
      _
    %v164 = vld [vmem:[%s0] sm:$0xff]
    %v165 = vld [vmem:[%s0 + $0x8] sm:$0xff]
    %v166 = vpack.c.bf16 %v164, %v164
    %v167 = vpack.c.bf16 %v165, %v165
    %v168 = vld [vmem:[#allocation2] sm:$0x3]
    %v169 = vpack.c.bf16 %v168, %v168
    %v170 = vld [vmem:[#allocation7] sm:$0xf]
    %v171 = vld [vmem:[#allocation7 + $0x4] sm:$0xf]
    %v174 = vunpack.c.l.b16 %v166
    %v175 = vunpack.c.l.b16 %v167
    %v176 = vpack.c.b16 %v175, %v174
    %v179 = vunpack.c.l.b16 %v170
    %v180 = vunpack.c.l.b16 %v171
    %v181 = vpack.c.b16 %v180, %v179
    %vm183 = vcmask 130048
    %v185 = vsel %vm183, %v176, 0
    %187 = vmatprep.subr.bf16.mxu0 0
    %188 = vmatpush1.bf16.msra.mxu0 0
    %189 = vmatprep.subr.bf16.mxu0 0
    %190 = vmatpush1.bf16.msra.mxu0 0
    %191 = vmatprep.subr.bf16.mxu0 0
    %192 = vmatpush1.bf16.msra.mxu0 0
    %193 = vmatprep.subr.bf16.mxu0 0
    %194 = vmatpush1.bf16.msra.mxu0 0
    %195 = vmatprep.subr.bf16.mxu0 0
    %196 = vmatpush1.bf16.msra.mxu0 0
    %197 = vmatprep.subr.bf16.mxu0 0
    %198 = vmatpush1.bf16.msra.mxu0 0
    %199 = vmatprep.subr.bf16.mxu0 0
    %200 = vmatpush1.bf16.msra.mxu0 0
    %201 = vmatprep.subr.bf16.mxu0 0
    %202 = vmatpush1.bf16.msra.mxu0 %v181
    %203 = vmatprep.subr.bf16.mxu0 0
    %204 = vmatpush2.bf16.msra.mxu0 0
    %205 = vmatprep.subr.bf16.mxu0 0
    %206 = vmatpush2.bf16.msra.mxu0 0
    %207 = vmatprep.subr.bf16.mxu0 0
    %208 = vmatpush2.bf16.msra.mxu0 0
    %209 = vmatprep.subr.bf16.mxu0 0
    %210 = vmatpush2.bf16.msra.mxu0 0
    %211 = vmatprep.subr.bf16.mxu0 0
    %212 = vmatpush2.bf16.msra.mxu0 0
    %213 = vmatprep.subr.bf16.mxu0 0
    %214 = vmatpush2.bf16.msra.mxu0 0
    %215 = vmatprep.subr.bf16.mxu0 0
    %216 = vmatpush2.bf16.msra.mxu0 0
    %217 = vmatprep.subr.bf16.mxu0 0
    %218 = vmatpush2.bf16.msra.mxu0 0
    %219 = vmatprep.mubr.bf16.mxu0 0
    %220 = vmatmul.mubr.bf16.gmra.mxu0 %v185
    %v221 = vpop.f32.mrf.mxu0
    %v222 = vadd.f32 0.0, %v221
    %v223 = vpop.f32.mrf.mxu0
    %v224 = vpop.f32.mrf.mxu0
    %v225 = vadd.f32 0.0, %v224
    %v226 = vpop.f32.mrf.mxu0
    %227 = vdwg.mxu0
    %v228 = vld [vmem:[#allocation8] sm:$0xf]
    %v229 = vld [vmem:[#allocation8 + $0x4] sm:$0xf]
    %v232 = vunpack.c.l.b16 %v228
    %v233 = vunpack.c.l.b16 %v229
    %v234 = vpack.c.b16 %v233, %v232
    %v237 = vsel %vm183, %v169, 0
    %239 = vmatprep.subr.bf16.mxu0 0
    %240 = vmatpush1.bf16.msra.mxu0 0
    %241 = vmatprep.subr.bf16.mxu0 0
    %242 = vmatpush1.bf16.msra.mxu0 0
    %243 = vmatprep.subr.bf16.mxu0 0
    %244 = vmatpush1.bf16.msra.mxu0 0
    %245 = vmatprep.subr.bf16.mxu0 0
    %246 = vmatpush1.bf16.msra.mxu0 0
    %247 = vmatprep.subr.bf16.mxu0 0
    %248 = vmatpush1.bf16.msra.mxu0 0
    %249 = vmatprep.subr.bf16.mxu0 0
    %250 = vmatpush1.bf16.msra.mxu0 0
    %251 = vmatprep.subr.bf16.mxu0 0
    %252 = vmatpush1.bf16.msra.mxu0 0
    %253 = vmatprep.subr.bf16.mxu0 0
    %254 = vmatpush1.bf16.msra.mxu0 %v234
    %255 = vmatprep.subr.bf16.mxu0 0
    %256 = vmatpush2.bf16.msra.mxu0 0
    %257 = vmatprep.subr.bf16.mxu0 0
    %258 = vmatpush2.bf16.msra.mxu0 0
    %259 = vmatprep.subr.bf16.mxu0 0
    %260 = vmatpush2.bf16.msra.mxu0 0
    %261 = vmatprep.subr.bf16.mxu0 0
    %262 = vmatpush2.bf16.msra.mxu0 0
    %263 = vmatprep.subr.bf16.mxu0 0
    %264 = vmatpush2.bf16.msra.mxu0 0
    %265 = vmatprep.subr.bf16.mxu0 0
    %266 = vmatpush2.bf16.msra.mxu0 0
    %267 = vmatprep.subr.bf16.mxu0 0
    %268 = vmatpush2.bf16.msra.mxu0 0
    %269 = vmatprep.subr.bf16.mxu0 0
    %270 = vmatpush2.bf16.msra.mxu0 0
    %271 = vmatprep.mubr.bf16.mxu0 0
    %272 = vmatmul.mubr.bf16.gmra.mxu0 %v237
    %v273 = vpop.f32.mrf.mxu0
    %v274 = vadd.f32 0.0, %v273
    %v275 = vpop.f32.mrf.mxu0
    %v276 = vpop.f32.mrf.mxu0
    %v277 = vpop.f32.mrf.mxu0
    %278 = vdwg.mxu0
    %v281 = vunpack.c.l.s4 1966171168
    %v282 = vunpack.c.0.s8 %v281
    %v283 = vlaneseq
    %v284 = vshrl.u32 %v283, 7
    %v285 = vsub.s32 %v282, %v284
    %v286 = vrot.slane %v274, %v285
    %v287 = vcombine.high %v286, %v286
    %v289 = vunpack.c.l.s4 1966171168
    %v290 = vunpack.c.0.s8 %v289
    %v291 = vlaneseq
    %v292 = vshrl.u32 %v291, 7
    %v293 = vsub.s32 %v290, %v292
    %v294 = vrot.slane %v286, %v293
    %v296 = vunpack.c.l.s4 1966171168
    %v297 = vunpack.c.0.s8 %v296
    %v298 = vlaneseq
    %v299 = vshrl.u32 %v298, 7
    %v300 = vsub.s32 %v297, %v299
    %v301 = vrot.slane %v287, %v300
    %v302 = vlaneseq
    %v303 = vshrl.u32 %v302, 7
    %v304 = vsub.s32 0, %v303
    %v305 = vrot.slane %v294, %v304
    %v306 = vlaneseq
    %v307 = vshrl.u32 %v306, 7
    %v308 = vsub.s32 0, %v307
    %v309 = vrot.slane %v301, %v308
    %v312 = vadd.f32 %v222, %v305
    %v313 = vadd.f32 %v225, %v309
    %v314 = vld [vmem:[#allocation10] sm:$0x1]
    %v316 = vlaneseq
    %v317 = vshrl.u32 %v316, 7
    %v318 = vsub.s32 0, %v317
    %v319 = vrot.slane %v314, %v318
    %v321 = vadd.f32 %v312, %v319
    %v322 = vadd.f32 %v313, %v319
    %v323 = vmax.f32 %v321, 0.0
    %v324 = vmax.f32 %v322, 0.0
    %v325 = vpack.c.bf16 %v324, %v323
    %v326 = vld [vmem:[%s6] sm:$0xf]
    %v327 = vld [vmem:[%s6 + $0x4] sm:$0xf]
    %v328 = vld [vmem:[%s6 + $0x8] sm:$0xf]
    %v329 = vld [vmem:[%s6 + $0xc] sm:$0xf]
    %v330 = vld [vmem:[#allocation11] sm:$0x1]
    %v332 = vlaneseq
    %v333 = vshrl.u32 %v332, 7
    %v334 = vsub.s32 0, %v333
    %v335 = vrot.slane %v330, %v334
    %v341 = vunpack.c.l.b16 %v326
    %v342 = vunpack.c.l.b16 %v327
    %v343 = vunpack.c.l.b16 %v328
    %v344 = vunpack.c.l.b16 %v329
    %v345 = vpack.c.b16 %v342, %v341
    %v346 = vpack.c.b16 %v344, %v343
    %vm349 = vcmask 261120
    %v351 = vsel %vm349, %v325, 0
    %353 = vmatprep.subr.bf16.mxu0 0
    %354 = vmatpush1.bf16.msra.mxu0 0
    %355 = vmatprep.subr.bf16.mxu0 0
    %356 = vmatpush1.bf16.msra.mxu0 0
    %357 = vmatprep.subr.bf16.mxu0 0
    %358 = vmatpush1.bf16.msra.mxu0 0
    %359 = vmatprep.subr.bf16.mxu0 0
    %360 = vmatpush1.bf16.msra.mxu0 0
    %361 = vmatprep.subr.bf16.mxu0 0
    %362 = vmatpush1.bf16.msra.mxu0 0
    %363 = vmatprep.subr.bf16.mxu0 0
    %364 = vmatpush1.bf16.msra.mxu0 0
    %365 = vmatprep.subr.bf16.mxu0 0
    %366 = vmatpush1.bf16.msra.mxu0 %v346
    %367 = vmatprep.subr.bf16.mxu0 0
    %368 = vmatpush1.bf16.msra.mxu0 %v345
    %369 = vmatprep.subr.bf16.mxu0 0
    %370 = vmatpush2.bf16.msra.mxu0 0
    %371 = vmatprep.subr.bf16.mxu0 0
    %372 = vmatpush2.bf16.msra.mxu0 0
    %373 = vmatprep.subr.bf16.mxu0 0
    %374 = vmatpush2.bf16.msra.mxu0 0
    %375 = vmatprep.subr.bf16.mxu0 0
    %376 = vmatpush2.bf16.msra.mxu0 0
    %377 = vmatprep.subr.bf16.mxu0 0
    %378 = vmatpush2.bf16.msra.mxu0 0
    %379 = vmatprep.subr.bf16.mxu0 0
    %380 = vmatpush2.bf16.msra.mxu0 0
    %381 = vmatprep.subr.bf16.mxu0 0
    %382 = vmatpush2.bf16.msra.mxu0 0
    %383 = vmatprep.subr.bf16.mxu0 0
    %384 = vmatpush2.bf16.msra.mxu0 0
    %385 = vmatprep.mubr.bf16.mxu0 0
    %386 = vmatmul.mubr.bf16.gmra.mxu0 %v351
    %v387 = vpop.f32.mrf.mxu0
    %v388 = vadd.f32 %v335, %v387
    %v389 = vpop.f32.mrf.mxu0
    %v390 = vpop.f32.mrf.mxu0
    %v391 = vadd.f32 %v335, %v390
    %v392 = vpop.f32.mrf.mxu0
    %393 = vdwg.mxu0
    %v394 = vmax.f32 %v388, 0.0
    %v395 = vmax.f32 %v391, 0.0
    %v396 = vld [vmem:[#allocation5] sm:$0x1]
    %v397 = vlaneseq
    %v398 = vshrl.u32 %v397, 7
    %v399 = vsub.s32 0, %v398
    %v400 = vrot.slane %v396, %v399
    %402 = vbcast.lane.b32.xlu0 %v400, 256
    %v403 = vpop.permute.xlu0 %402
    %v404 = vmul.f32 %v394, %v403
    %v405 = vmul.f32 %v395, %v403
    %v406 = vsel %vm349, %v404, 0.0
    %v407 = vrot.slane %v406, 4
    %v408 = vadd.f32 %v406, %v407
    %v409 = vrot.slane %v408, 2
    %v410 = vadd.f32 %v408, %v409
    %v411 = vrot.slane %v410, 1
    %v412 = vadd.f32 %v410, %v411
    %v413 = vsel %vm349, %v405, 0.0
    %v414 = vrot.slane %v413, 4
    %v415 = vadd.f32 %v413, %v414
    %v416 = vrot.slane %v415, 2
    %v417 = vadd.f32 %v415, %v416
    %v418 = vrot.slane %v417, 1
    %v419 = vadd.f32 %v417, %v418
    %v420 = vpack.c.bf16 %v412, %v412
    %v421 = vpack.c.bf16 %v419, %v419
    %v422 = vld [vmem:[#allocation13] sm:$0xf]
    %v423 = vld [vmem:[#allocation13 + $0x4] sm:$0xf]
    %v424 = vld [vmem:[#allocation13 + $0x8] sm:$0xf]
    %v425 = vld [vmem:[#allocation13 + $0xc] sm:$0xf]
    %v426 = vld [vmem:[#allocation14] sm:$0x1]
    %v428 = vlaneseq
    %v429 = vshrl.u32 %v428, 7
    %v430 = vsub.s32 0, %v429
    %v431 = vrot.slane %v426, %v430
    %v435 = vunpack.c.l.b16 %v420
    %v436 = vunpack.c.l.b16 %v421
    %vm437 = vcmask 1041409
    %v438 = vsel %vm437, %v436, %v435
    %v439 = vpack.c.b16 %v438, %v438
    %v444 = vunpack.c.l.b16 %v422
    %v445 = vunpack.c.l.b16 %v423
    %v446 = vunpack.c.l.b16 %v424
    %v447 = vunpack.c.l.b16 %v425
    %v448 = vpack.c.b16 %v445, %v444
    %v449 = vpack.c.b16 %v447, %v446
    %v453 = vsel %vm349, %v439, 0
    %455 = vmatprep.subr.bf16.mxu0 0
    %456 = vmatpush1.bf16.msra.mxu0 0
    %457 = vmatprep.subr.bf16.mxu0 0
    %458 = vmatpush1.bf16.msra.mxu0 0
    %459 = vmatprep.subr.bf16.mxu0 0
    %460 = vmatpush1.bf16.msra.mxu0 0
    %461 = vmatprep.subr.bf16.mxu0 0
    %462 = vmatpush1.bf16.msra.mxu0 0
    %463 = vmatprep.subr.bf16.mxu0 0
    %464 = vmatpush1.bf16.msra.mxu0 0
    %465 = vmatprep.subr.bf16.mxu0 0
    %466 = vmatpush1.bf16.msra.mxu0 0
    %467 = vmatprep.subr.bf16.mxu0 0
    %468 = vmatpush1.bf16.msra.mxu0 %v449
    %469 = vmatprep.subr.bf16.mxu0 0
    %470 = vmatpush1.bf16.msra.mxu0 %v448
    %471 = vmatprep.subr.bf16.mxu0 0
    %472 = vmatpush2.bf16.msra.mxu0 0
    %473 = vmatprep.subr.bf16.mxu0 0
    %474 = vmatpush2.bf16.msra.mxu0 0
    %475 = vmatprep.subr.bf16.mxu0 0
    %476 = vmatpush2.bf16.msra.mxu0 0
    %477 = vmatprep.subr.bf16.mxu0 0
    %478 = vmatpush2.bf16.msra.mxu0 0
    %479 = vmatprep.subr.bf16.mxu0 0
    %480 = vmatpush2.bf16.msra.mxu0 0
    %481 = vmatprep.subr.bf16.mxu0 0
    %482 = vmatpush2.bf16.msra.mxu0 0
    %483 = vmatprep.subr.bf16.mxu0 0
    %484 = vmatpush2.bf16.msra.mxu0 0
    %485 = vmatprep.subr.bf16.mxu0 0
    %486 = vmatpush2.bf16.msra.mxu0 0
    %487 = vmatprep.mubr.bf16.mxu0 0
    %488 = vmatmul.mubr.bf16.gmra.mxu0 %v453
    %v489 = vpop.f32.mrf.mxu0
    %v490 = vadd.f32 %v431, %v489
    %v491 = vpop.f32.mrf.mxu0
    %v492 = vpop.f32.mrf.mxu0
    %v493 = vpop.f32.mrf.mxu0
    %494 = vdwg.mxu0
    %v495 = vmax.f32 %v490, 0.0
    %v496 = vpack.c.bf16 %v495, %v495
    %v497 = vld [vmem:[#allocation16] sm:$0xf]
    %v498 = vld [vmem:[#allocation16 + $0x4] sm:$0xf]
    %v499 = vld [vmem:[#allocation16 + $0x8] sm:$0xf]
    %v500 = vld [vmem:[#allocation16 + $0xc] sm:$0xf]
    %v501 = vld [vmem:[%s11] sm:$0x1]
    %v503 = vlaneseq
    %v504 = vshrl.u32 %v503, 7
    %v505 = vsub.s32 0, %v504
    %v506 = vrot.slane %v501, %v505
    %v512 = vunpack.c.l.b16 %v497
    %v513 = vunpack.c.l.b16 %v498
    %v514 = vunpack.c.l.b16 %v499
    %v515 = vunpack.c.l.b16 %v500
    %v516 = vpack.c.b16 %v513, %v512
    %v517 = vpack.c.b16 %v515, %v514
    %v521 = vsel %vm349, %v496, 0
    %523 = vmatprep.subr.bf16.mxu0 0
    %524 = vmatpush1.bf16.msra.mxu0 0
    %525 = vmatprep.subr.bf16.mxu0 0
    %526 = vmatpush1.bf16.msra.mxu0 0
    %527 = vmatprep.subr.bf16.mxu0 0
    %528 = vmatpush1.bf16.msra.mxu0 0
    %529 = vmatprep.subr.bf16.mxu0 0
    %530 = vmatpush1.bf16.msra.mxu0 0
    %531 = vmatprep.subr.bf16.mxu0 0
    %532 = vmatpush1.bf16.msra.mxu0 0
    %533 = vmatprep.subr.bf16.mxu0 0
    %534 = vmatpush1.bf16.msra.mxu0 0
    %535 = vmatprep.subr.bf16.mxu0 0
    %536 = vmatpush1.bf16.msra.mxu0 %v517
    %537 = vmatprep.subr.bf16.mxu0 0
    %538 = vmatpush1.bf16.msra.mxu0 %v516
    %539 = vmatprep.subr.bf16.mxu0 0
    %540 = vmatpush2.bf16.msra.mxu0 0
    %541 = vmatprep.subr.bf16.mxu0 0
    %542 = vmatpush2.bf16.msra.mxu0 0
    %543 = vmatprep.subr.bf16.mxu0 0
    %544 = vmatpush2.bf16.msra.mxu0 0
    %545 = vmatprep.subr.bf16.mxu0 0
    %546 = vmatpush2.bf16.msra.mxu0 0
    %547 = vmatprep.subr.bf16.mxu0 0
    %548 = vmatpush2.bf16.msra.mxu0 0
    %549 = vmatprep.subr.bf16.mxu0 0
    %550 = vmatpush2.bf16.msra.mxu0 0
    %551 = vmatprep.subr.bf16.mxu0 0
    %552 = vmatpush2.bf16.msra.mxu0 0
    %553 = vmatprep.subr.bf16.mxu0 0
    %554 = vmatpush2.bf16.msra.mxu0 0
    %555 = vmatprep.mubr.bf16.mxu0 0
    %556 = vmatmul.mubr.bf16.gmra.mxu0 %v521
    %v557 = vpop.f32.mrf.mxu0
    %v558 = vadd.f32 %v506, %v557
    %v559 = vpop.f32.mrf.mxu0
    %v560 = vpop.f32.mrf.mxu0
    %v561 = vpop.f32.mrf.mxu0
    %562 = vdwg.mxu0
    %v563 = vmax.f32 %v558, 0.0
    %v564 = vld [vmem:[%s12] sm:$0xf]
    %v565 = vld [vmem:[%s12 + $0x4] sm:$0xf]
    %v566 = vpack.c.bf16 %v563, %v563
    %v567 = vld [vmem:[%s13] sm:$0xf]
    %v568 = vld [vmem:[%s13 + $0x4] sm:$0xf]
    %v569 = vld [vmem:[%s13 + $0x8] sm:$0xf]
    %v570 = vld [vmem:[%s13 + $0xc] sm:$0xf]
    %v575 = vunpack.c.l.b16 %v567
    %v576 = vunpack.c.l.b16 %v568
    %v577 = vunpack.c.l.b16 %v569
    %v578 = vunpack.c.l.b16 %v570
    %v579 = vpack.c.b16 %v576, %v575
    %v580 = vpack.c.b16 %v578, %v577
    %v584 = vsel %vm349, %v566, 0
    %586 = vmatprep.subr.bf16.mxu0 0
    %587 = vmatpush1.bf16.msra.mxu0 0
    %588 = vmatprep.subr.bf16.mxu0 0
    %589 = vmatpush1.bf16.msra.mxu0 0
    %590 = vmatprep.subr.bf16.mxu0 0
    %591 = vmatpush1.bf16.msra.mxu0 0
    %592 = vmatprep.subr.bf16.mxu0 0
    %593 = vmatpush1.bf16.msra.mxu0 0
    %594 = vmatprep.subr.bf16.mxu0 0
    %595 = vmatpush1.bf16.msra.mxu0 0
    %596 = vmatprep.subr.bf16.mxu0 0
    %597 = vmatpush1.bf16.msra.mxu0 0
    %598 = vmatprep.subr.bf16.mxu0 0
    %599 = vmatpush1.bf16.msra.mxu0 %v580
    %600 = vmatprep.subr.bf16.mxu0 0
    %601 = vmatpush1.bf16.msra.mxu0 %v579
    %602 = vmatprep.subr.bf16.mxu0 0
    %603 = vmatpush2.bf16.msra.mxu0 0
    %604 = vmatprep.subr.bf16.mxu0 0
    %605 = vmatpush2.bf16.msra.mxu0 0
    %606 = vmatprep.subr.bf16.mxu0 0
    %607 = vmatpush2.bf16.msra.mxu0 0
    %608 = vmatprep.subr.bf16.mxu0 0
    %609 = vmatpush2.bf16.msra.mxu0 0
    %610 = vmatprep.subr.bf16.mxu0 0
    %611 = vmatpush2.bf16.msra.mxu0 0
    %612 = vmatprep.subr.bf16.mxu0 0
    %613 = vmatpush2.bf16.msra.mxu0 0
    %614 = vmatprep.subr.bf16.mxu0 0
    %615 = vmatpush2.bf16.msra.mxu0 0
    %616 = vmatprep.subr.bf16.mxu0 0
    %617 = vmatpush2.bf16.msra.mxu0 0
    %618 = vmatprep.mubr.bf16.mxu0 0
    %619 = vmatmul.mubr.bf16.gmra.mxu0 %v584
    %v620 = vpop.f32.mrf.mxu0
    %v621 = vadd.f32 0.0, %v620
    %v622 = vpop.f32.mrf.mxu0
    %v623 = vpop.f32.mrf.mxu0
    %v624 = vpop.f32.mrf.mxu0
    %625 = vdwg.mxu0
    %v628 = vunpack.c.l.b16 %v564
    %v629 = vunpack.c.l.b16 %v565
    %v630 = vpack.c.b16 %v629, %v628
    %632 = vmatprep.subr.bf16.mxu0 0
    %633 = vmatpush1.bf16.msra.mxu0 0
    %634 = vmatprep.subr.bf16.mxu0 0
    %635 = vmatpush1.bf16.msra.mxu0 0
    %636 = vmatprep.subr.bf16.mxu0 0
    %637 = vmatpush1.bf16.msra.mxu0 0
    %638 = vmatprep.subr.bf16.mxu0 0
    %639 = vmatpush1.bf16.msra.mxu0 0
    %640 = vmatprep.subr.bf16.mxu0 0
    %641 = vmatpush1.bf16.msra.mxu0 0
    %642 = vmatprep.subr.bf16.mxu0 0
    %643 = vmatpush1.bf16.msra.mxu0 0
    %644 = vmatprep.subr.bf16.mxu0 0
    %645 = vmatpush1.bf16.msra.mxu0 0
    %646 = vmatprep.subr.bf16.mxu0 0
    %647 = vmatpush1.bf16.msra.mxu0 %v630
    %648 = vmatprep.subr.bf16.mxu0 0
    %649 = vmatpush2.bf16.msra.mxu0 0
    %650 = vmatprep.subr.bf16.mxu0 0
    %651 = vmatpush2.bf16.msra.mxu0 0
    %652 = vmatprep.subr.bf16.mxu0 0
    %653 = vmatpush2.bf16.msra.mxu0 0
    %654 = vmatprep.subr.bf16.mxu0 0
    %655 = vmatpush2.bf16.msra.mxu0 0
    %656 = vmatprep.subr.bf16.mxu0 0
    %657 = vmatpush2.bf16.msra.mxu0 0
    %658 = vmatprep.subr.bf16.mxu0 0
    %659 = vmatpush2.bf16.msra.mxu0 0
    %660 = vmatprep.subr.bf16.mxu0 0
    %661 = vmatpush2.bf16.msra.mxu0 0
    %662 = vmatprep.subr.bf16.mxu0 0
    %663 = vmatpush2.bf16.msra.mxu0 0
    %664 = vmatprep.mubr.bf16.mxu0 0
    %665 = vmatmul.mubr.bf16.gmra.mxu0 %v237
    %v666 = vpop.f32.mrf.mxu0
    %v667 = vadd.f32 %v621, %v666
    %v668 = vpop.f32.mrf.mxu0
    %v669 = vpop.f32.mrf.mxu0
    %v670 = vpop.f32.mrf.mxu0
    %671 = vdwg.mxu0
    %v672 = vld [vmem:[%s14] sm:$0x1]
    %v674 = vlaneseq
    %v675 = vshrl.u32 %v674, 7
    %v676 = vsub.s32 0, %v675
    %v677 = vrot.slane %v672, %v676
    %v679 = vadd.f32 %v667, %v677
    %vm680 = vcmask 123904
    %681 = vst.msk [vmem:[#allocation17] sm:$0x3] %vm680, %v679
    // Predicated region
    $region98: #{tpu_custom_call.1} parent=1 // pred_check
      _
    $region99: #{tpu_custom_call.1} parent=1 // pred_check_branch
      %683 = sbr.rel (0) target = $region101
    $region100: #{tpu_custom_call.1} parent=1 // pred_region
      %s685 = ssub.s32 32, 32
      %686 = vsyncadd [#allocation4], %s685
      %s688 = sshll.u32 [#allocation17], 4
      %s689 = int_to_ptr.vmem [resolvable:$true] %s688
      %691 = dma.vmem_to_hbm [thread:$0]  %s689, 32, %s15, [#allocation4]
    $region101: #{tpu_custom_call.1} parent=1 // pred_fallthru
      _
    // Predicated region
    $region102: #{tpu_custom_call.1} parent=1 // pred_check
      _
    $region103: #{tpu_custom_call.1} parent=1 // pred_check_branch
      %693 = sbr.rel (0) target = $region105
    $region104: #{tpu_custom_call.1} parent=1 // pred_region
      %694 = dma.done [#allocation4], 32
    $region105: #{tpu_custom_call.1} parent=1 // pred_fallthru
      _
    %695 = vsyncpa [#allocation3], 1
    %696 = vsyncpa [#allocation6], 1
    %697 = vsyncpa [#allocation9], 1
    %698 = vsyncpa [#allocation12], 1
    %699 = vsyncpa [#allocation15], 1
    %700 = vsyncpa [#allocation4], 1

</llo_original>
